<compile_context>
chip_gen: v7x
topology: tpu7x:2x2x1
jax: 0.10.0
libtpu: 0.0.40
codegen_flags: <defaults>
</compile_context>

<pallas_src>
import functools

import jax
import jax.numpy as jnp
from jax.experimental import pallas as pl
from jax.experimental.pallas import tpu as pltpu


def _round_up(a: int, m: int) -> int:
    return (a + m - 1) // m * m


def _fem_kernel(x_ref, lef_ref, w1_ref, w2_ref, o_ref):
    # x_ref:   (1, C1, tn)   activation tile (spatial on lanes)
    # lef_ref: (1, C2, tn)
    # w1_ref:  (Cout, C1)    resident weight slices (tiny)
    # w2_ref:  (Cout, C2)
    # o_ref:   (1, Cout, tn) lane-dense output tile
    x = x_ref[0]
    lef = lef_ref[0]
    acc = jnp.dot(w1_ref[...], x, preferred_element_type=jnp.float32)
    acc = acc + jnp.dot(w2_ref[...], lef, preferred_element_type=jnp.float32)
    o_ref[0] = acc.astype(o_ref.dtype)


@functools.partial(jax.jit, static_argnames=("tn_max",))
def fem_forward(x, lef, weight, *, tn_max: int = 2048):
    """FEM forward pass (1x1 conv over concat([x, lef], channel), no bias).

    Args:
      x:      (B, C1, H, W)  NCHW
      lef:    (B, C2, H, W)  NCHW
      weight: (Cout, C1+C2)  PyTorch Conv2d 1x1 weight squeezed from
              (Cout, Cin, 1, 1).

    Returns:
      (B, Cout, H, W) NCHW
    """
    B, C1, H, W = x.shape
    _, C2, H2, W2 = lef.shape
    assert (H2, W2) == (H, W), "x and lef must share spatial dims"
    Cout, Cin = weight.shape
    assert Cin == C1 + C2, "weight input channels must equal C1 + C2"

    HW = H * W

    # Free (metadata-only) reshapes: stay in NCHW layout, spatial flattened.
    x_f = x.reshape(B, C1, HW)
    lef_f = lef.reshape(B, C2, HW)

    # Split the weight so no activation concat is ever materialized.
    w1 = weight[:, :C1]   # (Cout, C1)
    w2 = weight[:, C1:]   # (Cout, C2)

    # Spatial tile: as large as practical, multiple of 128 (lane width).
    tn = min(tn_max, _round_up(HW, 128))
    grid = (B, pl.cdiv(HW, tn))

    out_flat = pl.pallas_call(
        _fem_kernel,
        out_shape=jax.ShapeDtypeStruct((B, Cout, HW), x.dtype),
        grid_spec=pltpu.PrefetchScalarGridSpec(
            num_scalar_prefetch=0,
            grid=grid,
            in_specs=[
                # Activations: spatial tile on lanes, full channel dim.
                pl.BlockSpec((1, C1, tn), lambda b, j: (b, 0, j)),
                pl.BlockSpec((1, C2, tn), lambda b, j: (b, 0, j)),
                # Weight slices: tiny, resident every grid step.
                pl.BlockSpec((Cout, C1), lambda b, j: (0, 0)),
                pl.BlockSpec((Cout, C2), lambda b, j: (0, 0)),
            ],
            out_specs=pl.BlockSpec((1, Cout, tn), lambda b, j: (b, 0, j)),
        ),
        compiler_params=pltpu.CompilerParams(
            # Both grid axes are independent -> sharded across TCs on v7x.
            dimension_semantics=("parallel", "parallel"),
            # Explicit limit with headroom for v7x's 64 MiB VMEM (default
            # scoped limit there is 32 MiB); plenty on v5e/v6e.
            vmem_limit_bytes=48 * 1024 * 1024,
        ),
    )(x_f, lef_f, w1, w2)

    # Free reshape back to NCHW — no transpose, no extra HBM pass.
    return out_flat.reshape(B, Cout, H, W)


if __name__ == "__main__":
    # Shapes consistent with FEM(c): the conv expects 5*c input channels,
    # so x carries 4*c channels and lef carries c channels.
    c = 4
    B, H, W = 2, 16, 16
    C1, C2 = 4 * c, c  # C1 + C2 == 5 * c

    key = jax.random.PRNGKey(0)
    kx, kl, kw = jax.random.split(key, 3)
    x = jax.random.normal(kx, (B, C1, H, W), dtype=jnp.float32)
    lef = jax.random.normal(kl, (B, C2, H, W), dtype=jnp.float32)
    # Weight matches nn.Conv2d(5c, c, 1, bias=False) squeezed to (c, 5c).
    bound = 1.0 / jnp.sqrt(5.0 * c)
    weight = jax.random.uniform(
        kw, (c, 5 * c), dtype=jnp.float32, minval=-bound, maxval=bound
    )

    out = fem_forward(x, lef, weight)
    out = jax.block_until_ready(out)

    # Reference: 1x1 conv over the channel concat == channel matmul.
    cat = jnp.concatenate([x, lef], axis=1)
    ref = jnp.einsum("bihw,oi->bohw", cat, weight)
    assert out.shape == (B, c, H, W)
    assert jnp.allclose(out, ref, atol=1e-4, rtol=1e-4)

    print("KERNEL_OK")
</pallas_src>

<mosaic_0001>
module attributes {stable_mosaic.version = 11 : i64} {
  func.func @_fem_kernel(%arg0: i32, %arg1: i32, %arg2: memref<1x16x256xf32, #tpu.memory_space<vmem>>, %arg3: memref<1x4x256xf32, #tpu.memory_space<vmem>>, %arg4: memref<4x16xf32, #tpu.memory_space<vmem>>, %arg5: memref<4x4xf32, #tpu.memory_space<vmem>>, %arg6: memref<1x4x256xf32, #tpu.memory_space<vmem>>) attributes {dimension_semantics = [#tpu.dimension_semantics<parallel>, #tpu.dimension_semantics<parallel>], iteration_bounds = array<i64: 2, 1>, scalar_prefetch = 0 : i64, scratch_operands = 0 : i64, tpu.core_type = #tpu.core_type<tc>, window_params = [{transform_indices = @transform_0, window_bounds = array<i64: 1, 16, 256>}, {transform_indices = @transform_1, window_bounds = array<i64: 1, 4, 256>}, {pipeline_mode = #tpu.pipeline_mode<synchronous>, transform_indices = @transform_2, window_bounds = array<i64: 4, 16>}, {pipeline_mode = #tpu.pipeline_mode<synchronous>, transform_indices = @transform_3, window_bounds = array<i64: 4, 4>}, {transform_indices = @transform_4, window_bounds = array<i64: 1, 4, 256>}]} {
    %c0 = arith.constant 0 : index
    %c0_0 = arith.constant 0 : index
    %c0_1 = arith.constant 0 : index
    %0 = vector.load %arg2[%c0, %c0_0, %c0_1] : memref<1x16x256xf32, #tpu.memory_space<vmem>>, vector<1x16x256xf32>
    %1 = vector.shape_cast %0 : vector<1x16x256xf32> to vector<16x256xf32>
    %c0_2 = arith.constant 0 : index
    %c0_3 = arith.constant 0 : index
    %c0_4 = arith.constant 0 : index
    %2 = vector.load %arg3[%c0_2, %c0_3, %c0_4] : memref<1x4x256xf32, #tpu.memory_space<vmem>>, vector<1x4x256xf32>
    %3 = vector.shape_cast %2 : vector<1x4x256xf32> to vector<4x256xf32>
    %c0_5 = arith.constant 0 : index
    %c0_6 = arith.constant 0 : index
    %4 = vector.load %arg4[%c0_5, %c0_6] : memref<4x16xf32, #tpu.memory_space<vmem>>, vector<4x16xf32>
    %cst = arith.constant dense<0.000000e+00> : vector<4x256xf32>
    %5 = tpu.matmul %4, %1, %cst {dimension_numbers = #tpu.dot_dimension_numbers<[1], [0], [0], [1], [0, 0, 1, 1], [], []>} : vector<4x16xf32>, vector<16x256xf32>, vector<4x256xf32> -> vector<4x256xf32>
    %c0_7 = arith.constant 0 : index
    %c0_8 = arith.constant 0 : index
    %6 = vector.load %arg5[%c0_7, %c0_8] : memref<4x4xf32, #tpu.memory_space<vmem>>, vector<4x4xf32>
    %cst_9 = arith.constant dense<0.000000e+00> : vector<4x256xf32>
    %7 = tpu.matmul %6, %3, %cst_9 {dimension_numbers = #tpu.dot_dimension_numbers<[1], [0], [0], [1], [0, 0, 1, 1], [], []>} : vector<4x4xf32>, vector<4x256xf32>, vector<4x256xf32> -> vector<4x256xf32>
    %8 = arith.addf %5, %7 : vector<4x256xf32>
    %c0_10 = arith.constant 0 : index
    %c0_11 = arith.constant 0 : index
    %c0_12 = arith.constant 0 : index
    %9 = vector.load %arg6[%c0_10, %c0_11, %c0_12] : memref<1x4x256xf32, #tpu.memory_space<vmem>>, vector<1x4x256xf32>
    %10 = vector.shape_cast %9 : vector<1x4x256xf32> to vector<4x256xf32>
    %11 = vector.shape_cast %8 : vector<4x256xf32> to vector<1x4x256xf32>
    tpu.vector_store %arg6[%c0_10, %c0_11, %c0_12], %11 {strides = array<i32>} : memref<1x4x256xf32, #tpu.memory_space<vmem>>, vector<1x4x256xf32>,
    return
  }
  func.func @transform_0(%arg0: i32, %arg1: i32) -> (i32, i32, i32) {
    %c0_i32 = arith.constant 0 : i32
    %c0_i32_0 = arith.constant 0 : i32
    return %arg0, %c0_i32, %arg1 : i32, i32, i32
  }
  func.func @transform_1(%arg0: i32, %arg1: i32) -> (i32, i32, i32) {
    %c0_i32 = arith.constant 0 : i32
    %c0_i32_0 = arith.constant 0 : i32
    return %arg0, %c0_i32, %arg1 : i32, i32, i32
  }
  func.func @transform_2(%arg0: i32, %arg1: i32) -> (i32, i32) {
    %c0_i32 = arith.constant 0 : i32
    %c0_i32_0 = arith.constant 0 : i32
    %c0_i32_1 = arith.constant 0 : i32
    return %c0_i32, %c0_i32_0 : i32, i32
  }
  func.func @transform_3(%arg0: i32, %arg1: i32) -> (i32, i32) {
    %c0_i32 = arith.constant 0 : i32
    %c0_i32_0 = arith.constant 0 : i32
    %c0_i32_1 = arith.constant 0 : i32
    return %c0_i32, %c0_i32_0 : i32, i32
  }
  func.func @transform_4(%arg0: i32, %arg1: i32) -> (i32, i32, i32) {
    %c0_i32 = arith.constant 0 : i32
    %c0_i32_0 = arith.constant 0 : i32
    return %arg0, %c0_i32, %arg1 : i32, i32, i32
  }
}

</mosaic_0001>

<llo_original>
// kernel: fem_forward.1
$region0: #{fem_forward.1}
  #allocation0 [shape = 'u32[]', space=smem, size = 0x4, offset = 0x4, fixed_abs, tag = 'smem constant byte address 0x4 - core index']
  #allocation1 [shape = 'u32[144,128]{1,0:T(1,128)}', space=vmem, size = 0x12000, scoped, tag = 'internal scratch']
  %s0 = inlined_call_operand.vmem [shape: f32[2,16,256], index: 0, kind: input, shape index: {}]
  %s1 = inlined_call_operand.vmem [shape: f32[2,4,256], index: 1, kind: input, shape index: {}]
  %s2 = inlined_call_operand.vmem [shape: f32[4,16], index: 2, kind: input, shape index: {}]
  %s3 = inlined_call_operand.vmem [shape: f32[4,4], index: 3, kind: input, shape index: {}]
  %s4 = inlined_call_operand.vmem [shape: f32[2,4,256], index: 4, kind: output, shape index: {}]
  %s5 = sld [smem:[#allocation0]]
  $region49: #{fem_forward.1} parent=0
    _
  %s7 = ssub.s32 1, %s5
  %s8 = scalar_select 0, %s7, %s5
  loop: start=0, step=1, limit=4
  $region2: #{fem_forward.1} parent=0 // loop_pre_header
    _
  $region3: #{fem_forward.1} parent=0 // loop_header
    %s10 = sphi 0, %s14
    %p11 = scmp.ge.s32.totalorder %s10, 4
    %s17 = sphi 0, %s29
    %s18 = sphi 0, %s25
    %s19 = sphi 0, %s17
    %s20 = sphi 0, %s18
    %s21 = sphi 0, %s19
    %s22 = sphi 0, %s20
    %s34 = sphi 0, %s36
    %s37 = sphi 0, %s34
    %s38 = sphi 0, %s37
    %s54 = sphi 0, %s38
    %s62 = sphi 0, %s64
    %s65 = sphi 0, %s62
    %s66 = sphi 0, %s65
    %s82 = sphi 0, %s66
    %s86 = sphi 0, %s86
    %s88 = sphi 0, %s86
    %s89 = sphi 0, %s88
    %s103 = sphi 0, %s89
    %s107 = sphi 0, %s107
    %s109 = sphi 0, %s107
    %s110 = sphi 0, %s109
    %s124 = sphi 0, %s110
    %s132 = sphi 0, %s134
    %s135 = sphi 0, %s132
    %s136 = sphi 0, %s135
    %s152 = sphi 0, %s136
  $region4: #{fem_forward.1} parent=0 // loop_header_branch
    %13 = sbr.rel (%p11) target = $region8
  $region5: #{fem_forward.1} parent=0 // loop_body
    %s15 = ssub.s32 %s10, 1
    %s16 = ssub.s32 %s10, 2
    %s23 = sadd.s32 1, %s18
    %p24 = scmp.ge.s32.totalorder %s23, 1
    %s25 = scalar_select %p24, 0, %s23
    %s26 = sadd.s32 1, %s17
    %s27 = scalar_select %p24, %s26, %s17
    %p28 = scmp.ge.s32.totalorder %s27, 2
    %s29 = scalar_select %p28, 0, %s27
    %s30 = ssub.s32 %s17, %s29
    %s31 = ssub.s32 %s18, %s25
    %s32 = sor.u32 %s30, %s31
    %p33 = scmp.eq.s32.totalorder %s32, 0
    %s35 = sadd.s32 %s34, 1
    %s36 = scalar_select %p33, %s34, %s35
    %p39 = pneg %p33
    %p40 = scmp.eq.s32.totalorder %s10, 1
    %p41 = por %p39, %p40
    %p42 = scmp.ne.s32.totalorder %s34, %s37
    %p43 = scmp.eq.s32.totalorder %s10, 0
    %p44 = por %p42, %p43
    %p45 = scmp.ne.s32.totalorder %s34, %s37
    %p46 = scmp.eq.s32.totalorder %s15, 1
    %p47 = por %p45, %p46
    %p48 = scmp.ne.s32.totalorder %s37, %s38
    %p49 = scmp.eq.s32.totalorder %s15, 0
    %p50 = por %p48, %p49
    %p51 = scmp.ne.s32.totalorder %s37, %s38
    %p52 = scmp.eq.s32.totalorder %s16, 1
    %p53 = por %p51, %p52
    %p55 = scmp.ne.s32.totalorder %s38, %s54
    %p56 = scmp.eq.s32.totalorder %s16, 0
    %p57 = por %p55, %p56
    %s58 = ssub.s32 %s17, %s29
    %s59 = ssub.s32 %s18, %s25
    %s60 = sor.u32 %s58, %s59
    %p61 = scmp.eq.s32.totalorder %s60, 0
    %s63 = sadd.s32 %s62, 1
    %s64 = scalar_select %p61, %s62, %s63
    %p67 = pneg %p61
    %p68 = scmp.eq.s32.totalorder %s10, 1
    %p69 = por %p67, %p68
    %p70 = scmp.ne.s32.totalorder %s62, %s65
    %p71 = scmp.eq.s32.totalorder %s10, 0
    %p72 = por %p70, %p71
    %p73 = scmp.ne.s32.totalorder %s62, %s65
    %p74 = scmp.eq.s32.totalorder %s15, 1
    %p75 = por %p73, %p74
    %p76 = scmp.ne.s32.totalorder %s65, %s66
    %p77 = scmp.eq.s32.totalorder %s15, 0
    %p78 = por %p76, %p77
    %p79 = scmp.ne.s32.totalorder %s65, %s66
    %p80 = scmp.eq.s32.totalorder %s16, 1
    %p81 = por %p79, %p80
    %p83 = scmp.ne.s32.totalorder %s66, %s82
    %p84 = scmp.eq.s32.totalorder %s16, 0
    %p85 = por %p83, %p84
    %s87 = sadd.s32 %s86, 1
    %p90 = scmp.eq.s32.totalorder %s10, 1
    %p91 = scmp.ne.s32.totalorder %s86, %s88
    %p92 = scmp.eq.s32.totalorder %s10, 0
    %p93 = por %p91, %p92
    %p94 = scmp.ne.s32.totalorder %s86, %s88
    %p95 = scmp.eq.s32.totalorder %s15, 1
    %p96 = por %p94, %p95
    %p97 = scmp.ne.s32.totalorder %s88, %s89
    %p98 = scmp.eq.s32.totalorder %s15, 0
    %p99 = por %p97, %p98
    %p100 = scmp.ne.s32.totalorder %s88, %s89
    %p101 = scmp.eq.s32.totalorder %s16, 1
    %p102 = por %p100, %p101
    %p104 = scmp.ne.s32.totalorder %s89, %s103
    %p105 = scmp.eq.s32.totalorder %s16, 0
    %p106 = por %p104, %p105
    %s108 = sadd.s32 %s107, 1
    %p111 = scmp.eq.s32.totalorder %s10, 1
    %p112 = scmp.ne.s32.totalorder %s107, %s109
    %p113 = scmp.eq.s32.totalorder %s10, 0
    %p114 = por %p112, %p113
    %p115 = scmp.ne.s32.totalorder %s107, %s109
    %p116 = scmp.eq.s32.totalorder %s15, 1
    %p117 = por %p115, %p116
    %p118 = scmp.ne.s32.totalorder %s109, %s110
    %p119 = scmp.eq.s32.totalorder %s15, 0
    %p120 = por %p118, %p119
    %p121 = scmp.ne.s32.totalorder %s109, %s110
    %p122 = scmp.eq.s32.totalorder %s16, 1
    %p123 = por %p121, %p122
    %p125 = scmp.ne.s32.totalorder %s110, %s124
    %p126 = scmp.eq.s32.totalorder %s16, 0
    %p127 = por %p125, %p126
    %s128 = ssub.s32 %s17, %s29
    %s129 = ssub.s32 %s18, %s25
    %s130 = sor.u32 %s128, %s129
    %p131 = scmp.eq.s32.totalorder %s130, 0
    %s133 = sadd.s32 %s132, 1
    %s134 = scalar_select %p131, %s132, %s133
    %p137 = pneg %p131
    %p138 = scmp.eq.s32.totalorder %s10, 1
    %p139 = por %p137, %p138
    %p140 = scmp.ne.s32.totalorder %s132, %s135
    %p141 = scmp.eq.s32.totalorder %s10, 0
    %p142 = por %p140, %p141
    %p143 = scmp.ne.s32.totalorder %s132, %s135
    %p144 = scmp.eq.s32.totalorder %s15, 1
    %p145 = por %p143, %p144
    %p146 = scmp.ne.s32.totalorder %s135, %s136
    %p147 = scmp.eq.s32.totalorder %s15, 0
    %p148 = por %p146, %p147
    %p149 = scmp.ne.s32.totalorder %s135, %s136
    %p150 = scmp.eq.s32.totalorder %s16, 1
    %p151 = por %p149, %p150
    %p153 = scmp.ne.s32.totalorder %s136, %s152
    %p154 = scmp.eq.s32.totalorder %s16, 0
    %p155 = por %p153, %p154
    %p156 = scmp.le.s32.totalorder 1, %s10
    %p157 = scmp.lt.s32.totalorder %s10, 3
    %p158 = pnand %p156, %p157
    %p159 = pneg %p158
    // Predicated region
    $region9: #{fem_forward.1} parent=5 // pred_check
      _
    $region10: #{fem_forward.1} parent=5 // pred_check_branch
      %161 = sbr.rel (%p158) target = $region12
    $region11: #{fem_forward.1} parent=5 // pred_region
      %s162 = ssub.s32 %s10, 1
      // Predicated region
      $region13: #{fem_forward.1} parent=11 // pred_check
        %p163 = pneg %p99
      $region14: #{fem_forward.1} parent=11 // pred_check_branch
        %165 = sbr.rel (%p163) target = $region16
      $region15: #{fem_forward.1} parent=11 // pred_region
        _
      $region16: #{fem_forward.1} parent=11 // pred_fallthru
        _
      // Predicated region
      $region17: #{fem_forward.1} parent=11 // pred_check
        %p166 = pneg %p120
      $region18: #{fem_forward.1} parent=11 // pred_check_branch
        %168 = sbr.rel (%p166) target = $region20
      $region19: #{fem_forward.1} parent=11 // pred_region
        _
      $region20: #{fem_forward.1} parent=11 // pred_fallthru
        _
    $region12: #{fem_forward.1} parent=5 // pred_fallthru
      _
    %p169 = scmp.lt.s32.totalorder %s10, 2
    // Predicated region
    $region21: #{fem_forward.1} parent=5 // pred_check
      %p170 = pneg %p169
    $region22: #{fem_forward.1} parent=5 // pred_check_branch
      %172 = sbr.rel (%p170) target = $region24
    $region23: #{fem_forward.1} parent=5 // pred_region
      // Predicated region
      $region25: #{fem_forward.1} parent=23 // pred_check
        %p173 = pneg %p44
      $region26: #{fem_forward.1} parent=23 // pred_check_branch
        %175 = sbr.rel (%p173) target = $region28
      $region27: #{fem_forward.1} parent=23 // pred_region
        %s176 = smul.u32 2, %s18
        %p177 = scmp.lt.s32.totalorder %s17, 1
        %s178 = scalar_select %p177, %s17, 1
        %p179 = scmp.lt.s32.totalorder %s176, 1
        %s180 = scalar_select %p179, %s176, 1
        %s181 = smul.addr %s178, 4
        %s182 = sadd.s32 %s180, %s181
        %s183 = smul.addr %s182, 8
        %s184 = scalar_lea.vmem %s0, %s183
        %s185 = smul.u32 2, %s18
      $region28: #{fem_forward.1} parent=23 // pred_fallthru
        _
      // Predicated region
      $region29: #{fem_forward.1} parent=23 // pred_check
        %p186 = pneg %p72
      $region30: #{fem_forward.1} parent=23 // pred_check_branch
        %188 = sbr.rel (%p186) target = $region32
      $region31: #{fem_forward.1} parent=23 // pred_region
        %s189 = smul.u32 2, %s18
        %p190 = scmp.lt.s32.totalorder %s17, 1
        %s191 = scalar_select %p190, %s17, 1
        %p192 = scmp.lt.s32.totalorder %s189, 1
        %s193 = scalar_select %p192, %s189, 1
        %s194 = smul.addr %s191, 2
        %s195 = sadd.s32 %s193, %s194
        %s196 = smul.addr %s195, 4
        %s197 = scalar_lea.vmem %s1, %s196
        %s198 = smul.u32 2, %s18
      $region32: #{fem_forward.1} parent=23 // pred_fallthru
        _
    $region24: #{fem_forward.1} parent=5 // pred_fallthru
      _
    %p199 = scmp.le.s32.totalorder 1, %s10
    %p200 = scmp.lt.s32.totalorder %s10, 3
    %p201 = pnand %p199, %p200
    %p202 = pneg %p201
    // Predicated region
    $region33: #{fem_forward.1} parent=5 // pred_check
      _
    $region34: #{fem_forward.1} parent=5 // pred_check_branch
      %204 = sbr.rel (%p201) target = $region36
    $region35: #{fem_forward.1} parent=5 // pred_region
      %s205 = ssub.s32 %s10, 1
      %s206 = smul.u32 2, %s20
      %p207 = scmp.lt.s32.totalorder %s19, 1
      %s208 = scalar_select %p207, %s19, 1
      %p209 = scmp.lt.s32.totalorder %s206, 1
      %s210 = scalar_select %p209, %s206, 1
      %s211 = smul.addr %s208, 4
      %s212 = sadd.s32 %s210, %s211
      %s213 = smul.addr %s212, 8
      %s214 = scalar_lea.vmem %s0, %s213
      %p215 = pneg %p50
      %p216 = pneg %p47
      %s217 = smul.u32 2, %s20
      %p218 = scmp.lt.s32.totalorder %s19, 1
      %s219 = scalar_select %p218, %s19, 1
      %p220 = scmp.lt.s32.totalorder %s217, 1
      %s221 = scalar_select %p220, %s217, 1
      %s222 = smul.addr %s219, 2
      %s223 = sadd.s32 %s221, %s222
      %s224 = smul.addr %s223, 4
      %s225 = scalar_lea.vmem %s1, %s224
      %p226 = pneg %p78
      %p227 = pneg %p75
      %p228 = pneg %p99
      %p229 = pneg %p96
      %p230 = pneg %p120
      %p231 = pneg %p117
      %p232 = pneg %p148
      %p233 = pneg %p145
      %s234 = smul.u32 2, %s20
      %p235 = scmp.lt.s32.totalorder %s19, 1
      %s236 = scalar_select %p235, %s19, 1
      %p237 = scmp.lt.s32.totalorder %s234, 1
      %s238 = scalar_select %p237, %s234, 1
      %s239 = smul.addr %s236, 2
      %s240 = sadd.s32 %s238, %s239
      %s241 = smul.addr %s240, 4
      %s242 = scalar_lea.vmem %s4, %s241
      %s243 = smul.u32 2, %s20
      %p244 = scmp.lt.s32.totalorder %s19, 1
      %s245 = scalar_select %p244, %s19, 1
      %p246 = scmp.lt.s32.totalorder %s243, 1
      %s247 = scalar_select %p246, %s243, 1
      %s248 = smul.addr %s245, 4
      %s249 = sadd.s32 %s247, %s248
      %s250 = smul.addr %s249, 8
      %s251 = scalar_lea.vmem %s0, %s250
      %s252 = smul.u32 2, %s20
      %s253 = smul.u32 2, %s20
      %p254 = scmp.lt.s32.totalorder %s19, 1
      %s255 = scalar_select %p254, %s19, 1
      %p256 = scmp.lt.s32.totalorder %s253, 1
      %s257 = scalar_select %p256, %s253, 1
      %s258 = smul.addr %s255, 2
      %s259 = sadd.s32 %s257, %s258
      %s260 = smul.addr %s259, 4
      %s261 = scalar_lea.vmem %s1, %s260
      %s262 = smul.u32 2, %s20
      %s263 = smul.u32 2, %s20
      %p264 = scmp.lt.s32.totalorder %s19, 1
      %s265 = scalar_select %p264, %s19, 1
      %p266 = scmp.lt.s32.totalorder %s263, 1
      %s267 = scalar_select %p266, %s263, 1
      %s268 = smul.addr %s265, 2
      %s269 = sadd.s32 %s267, %s268
      %s270 = smul.addr %s269, 4
      %s271 = scalar_lea.vmem %s4, %s270
      %s272 = smul.u32 2, %s20
      %v273 = vld [vmem:[%s251] sm:$0xff]
      %v274 = vld [vmem:[%s251 + $0x8] sm:$0xff]
      %v275 = vld [vmem:[%s251 + $0x10] sm:$0xff]
      %v276 = vld [vmem:[%s251 + $0x18] sm:$0xff]
      %v277 = vld [vmem:[%s261] sm:$0xff]
      %v278 = vld [vmem:[%s2] sm:$0xf]
      %v279 = vld [vmem:[%s3] sm:$0xf]
      %v281 = vcombine.high %v277, %v277
      %vm282 = vcmask 31744
      %v284 = vsel %vm282, %v279, 0
      %vm286 = vcmask 1043456
      %v287 = vsel %vm286, %v277, 0
      %v289 = vsel %vm286, %v281, 0
      %291 = vmatprep.subr.mxu0 %v289
      %292 = vmatpush1.msra.mxu0 %v287
      %293 = vmatprep.subr.mxu0 0.0
      %294 = vmatpush1.msra.mxu0 0.0
      %295 = vmatprep.subr.mxu0 0.0
      %296 = vmatpush1.msra.mxu0 0.0
      %297 = vmatprep.subr.mxu0 0.0
      %298 = vmatpush1.msra.mxu0 0.0
      %299 = vmatprep.subr.mxu0 0.0
      %300 = vmatpush1.msra.mxu0 0.0
      %301 = vmatprep.subr.mxu0 0.0
      %302 = vmatpush1.msra.mxu0 0.0
      %303 = vmatprep.subr.mxu0 0.0
      %304 = vmatpush1.msra.mxu0 0.0
      %305 = vmatprep.subr.mxu0 0.0
      %306 = vmatpush1.msra.mxu0 0.0
      %307 = vmatprep.subr.mxu0 0.0
      %308 = vmatpush1.msra.mxu0 0.0
      %309 = vmatprep.subr.mxu0 0.0
      %310 = vmatpush1.msra.mxu0 0.0
      %311 = vmatprep.subr.mxu0 0.0
      %312 = vmatpush1.msra.mxu0 0.0
      %313 = vmatprep.subr.mxu0 0.0
      %314 = vmatpush1.msra.mxu0 0.0
      %315 = vmatprep.subr.mxu0 0.0
      %316 = vmatpush1.msra.mxu0 0.0
      %317 = vmatprep.subr.mxu0 0.0
      %318 = vmatpush1.msra.mxu0 0.0
      %319 = vmatprep.subr.mxu0 0.0
      %320 = vmatpush1.msra.mxu0 0.0
      %321 = vmatprep.subr.mxu0 0.0
      %322 = vmatpush1.msra.mxu0 0.0
      %323 = vmatprep.subr.mxu0 0.0
      %324 = vmatpush1.msra.mxu0 0.0
      %325 = vmatprep.subr.mxu0 0.0
      %326 = vmatpush1.msra.mxu0 0.0
      %327 = vmatprep.subr.mxu0 0.0
      %328 = vmatpush1.msra.mxu0 0.0
      %329 = vmatprep.subr.mxu0 0.0
      %330 = vmatpush1.msra.mxu0 0.0
      %331 = vmatprep.subr.mxu0 0.0
      %332 = vmatpush1.msra.mxu0 0.0
      %333 = vmatprep.subr.mxu0 0.0
      %334 = vmatpush1.msra.mxu0 0.0
      %335 = vmatprep.subr.mxu0 0.0
      %336 = vmatpush1.msra.mxu0 0.0
      %337 = vmatprep.subr.mxu0 0.0
      %338 = vmatpush1.msra.mxu0 0.0
      %339 = vmatprep.subr.mxu0 0.0
      %340 = vmatpush1.msra.mxu0 0.0
      %341 = vmatprep.subr.mxu0 0.0
      %342 = vmatpush1.msra.mxu0 0.0
      %343 = vmatprep.subr.mxu0 0.0
      %344 = vmatpush1.msra.mxu0 0.0
      %345 = vmatprep.subr.mxu0 0.0
      %346 = vmatpush1.msra.mxu0 0.0
      %347 = vmatprep.subr.mxu0 0.0
      %348 = vmatpush1.msra.mxu0 0.0
      %349 = vmatprep.subr.mxu0 0.0
      %350 = vmatpush1.msra.mxu0 0.0
      %351 = vmatprep.subr.mxu0 0.0
      %352 = vmatpush1.msra.mxu0 0.0
      %353 = vmatprep.subr.mxu0 0.0
      %354 = vmatpush1.msra.mxu0 0.0
      %355 = vmatprep.mubr.f32.mxu0 0.0
      %356 = vmatmul.mubr.f32.gmra.mrb[0].mxu0 %v284
      %v357 = vpop.f32.mrb[0].mxu0
      %v358 = vadd.f32 0.0, %v357
      %v359 = vpop.f32.mrb[0].mxu0
      %v360 = vadd.f32 0.0, %v359
      %361 = vdwg.mxu0
      %vm362 = vcmask 130048
      %v364 = vsel %vm362, %v278, 0
      %366 = vmatprep.subr.mxu0 %v274
      %367 = vmatpush1.msra.mxu0 %v273
      %368 = vmatprep.subr.mxu0 %v276
      %369 = vmatpush1.msra.mxu0 %v275
      %370 = vmatprep.subr.mxu0 0.0
      %371 = vmatpush1.msra.mxu0 0.0
      %372 = vmatprep.subr.mxu0 0.0
      %373 = vmatpush1.msra.mxu0 0.0
      %374 = vmatprep.subr.mxu0 0.0
      %375 = vmatpush1.msra.mxu0 0.0
      %376 = vmatprep.subr.mxu0 0.0
      %377 = vmatpush1.msra.mxu0 0.0
      %378 = vmatprep.subr.mxu0 0.0
      %379 = vmatpush1.msra.mxu0 0.0
      %380 = vmatprep.subr.mxu0 0.0
      %381 = vmatpush1.msra.mxu0 0.0
      %382 = vmatprep.subr.mxu0 0.0
      %383 = vmatpush1.msra.mxu0 0.0
      %384 = vmatprep.subr.mxu0 0.0
      %385 = vmatpush1.msra.mxu0 0.0
      %386 = vmatprep.subr.mxu0 0.0
      %387 = vmatpush1.msra.mxu0 0.0
      %388 = vmatprep.subr.mxu0 0.0
      %389 = vmatpush1.msra.mxu0 0.0
      %390 = vmatprep.subr.mxu0 0.0
      %391 = vmatpush1.msra.mxu0 0.0
      %392 = vmatprep.subr.mxu0 0.0
      %393 = vmatpush1.msra.mxu0 0.0
      %394 = vmatprep.subr.mxu0 0.0
      %395 = vmatpush1.msra.mxu0 0.0
      %396 = vmatprep.subr.mxu0 0.0
      %397 = vmatpush1.msra.mxu0 0.0
      %398 = vmatprep.subr.mxu0 0.0
      %399 = vmatpush1.msra.mxu0 0.0
      %400 = vmatprep.subr.mxu0 0.0
      %401 = vmatpush1.msra.mxu0 0.0
      %402 = vmatprep.subr.mxu0 0.0
      %403 = vmatpush1.msra.mxu0 0.0
      %404 = vmatprep.subr.mxu0 0.0
      %405 = vmatpush1.msra.mxu0 0.0
      %406 = vmatprep.subr.mxu0 0.0
      %407 = vmatpush1.msra.mxu0 0.0
      %408 = vmatprep.subr.mxu0 0.0
      %409 = vmatpush1.msra.mxu0 0.0
      %410 = vmatprep.subr.mxu0 0.0
      %411 = vmatpush1.msra.mxu0 0.0
      %412 = vmatprep.subr.mxu0 0.0
      %413 = vmatpush1.msra.mxu0 0.0
      %414 = vmatprep.subr.mxu0 0.0
      %415 = vmatpush1.msra.mxu0 0.0
      %416 = vmatprep.subr.mxu0 0.0
      %417 = vmatpush1.msra.mxu0 0.0
      %418 = vmatprep.subr.mxu0 0.0
      %419 = vmatpush1.msra.mxu0 0.0
      %420 = vmatprep.subr.mxu0 0.0
      %421 = vmatpush1.msra.mxu0 0.0
      %422 = vmatprep.subr.mxu0 0.0
      %423 = vmatpush1.msra.mxu0 0.0
      %424 = vmatprep.subr.mxu0 0.0
      %425 = vmatpush1.msra.mxu0 0.0
      %426 = vmatprep.subr.mxu0 0.0
      %427 = vmatpush1.msra.mxu0 0.0
      %428 = vmatprep.subr.mxu0 0.0
      %429 = vmatpush1.msra.mxu0 0.0
      %430 = vmatprep.mubr.f32.mxu0 0.0
      %431 = vmatmul.mubr.f32.gmra.mrb[0].mxu0 %v364
      %v432 = vpop.f32.mrb[0].mxu0
      %v433 = vadd.f32 %v358, %v432
      %v434 = vpop.f32.mrb[0].mxu0
      %v435 = vadd.f32 %v360, %v434
      %436 = vdwg.mxu0
      %v439 = vcombine.low %v433, %v435
      %441 = vst [vmem:[%s271] sm:$0xff] %v439
      %s442 = smul.u32 2, %s20
      %p443 = scmp.lt.s32.totalorder %s19, 1
      %s444 = scalar_select %p443, %s19, 1
      %p445 = scmp.lt.s32.totalorder %s442, 1
      %s446 = scalar_select %p445, %s442, 1
      %s447 = smul.addr %s444, 2
      %s448 = sadd.s32 %s446, %s447
      %s449 = smul.addr %s448, 4
      %s450 = scalar_lea.vmem %s4, %s449
      // Predicated region
      $region37: #{fem_forward.1} parent=35 // pred_check
        %p451 = pneg %p145
      $region38: #{fem_forward.1} parent=35 // pred_check_branch
        %453 = sbr.rel (%p451) target = $region40
      $region39: #{fem_forward.1} parent=35 // pred_region
        %s454 = smul.u32 2, %s20
      $region40: #{fem_forward.1} parent=35 // pred_fallthru
        _
    $region36: #{fem_forward.1} parent=5 // pred_fallthru
      _
    %p455 = scmp.le.s32.totalorder 2, %s10
    // Predicated region
    $region41: #{fem_forward.1} parent=5 // pred_check
      %p456 = pneg %p455
    $region42: #{fem_forward.1} parent=5 // pred_check_branch
      %458 = sbr.rel (%p456) target = $region44
    $region43: #{fem_forward.1} parent=5 // pred_region
      %s459 = ssub.s32 %s10, 2
      // Predicated region
      $region45: #{fem_forward.1} parent=43 // pred_check
        %p460 = pneg %p151
      $region46: #{fem_forward.1} parent=43 // pred_check_branch
        %462 = sbr.rel (%p460) target = $region48
      $region47: #{fem_forward.1} parent=43 // pred_region
        %s463 = smul.u32 2, %s22
        %p464 = scmp.lt.s32.totalorder %s21, 1
        %s465 = scalar_select %p464, %s21, 1
        %p466 = scmp.lt.s32.totalorder %s463, 1
        %s467 = scalar_select %p466, %s463, 1
        %s468 = smul.addr %s465, 2
        %s469 = sadd.s32 %s467, %s468
        %s470 = smul.addr %s469, 4
        %s471 = scalar_lea.vmem %s4, %s470
      $region48: #{fem_forward.1} parent=43 // pred_fallthru
        _
    $region44: #{fem_forward.1} parent=5 // pred_fallthru
      _
  $region6: #{fem_forward.1} parent=0 // loop_footer
    %s14 = sadd.s32 1, %s10
  $region7: #{fem_forward.1} parent=0 // loop_footer_branch
    %9 = sbr.rel target = $region3
  $region8: #{fem_forward.1} parent=0 // loop_exit
    _

</llo_original>
